<compile_context>
chip_gen: v7x
topology: tpu7x:2x2x1
jax: 0.10.0
libtpu: 0.0.40
codegen_flags: <defaults>
</compile_context>

<pallas_src>
import functools

import jax
import jax.numpy as jnp
from jax import lax
from jax.experimental import pallas as pl
from jax.experimental.pallas import tpu as pltpu

BN_EPS = 1e-5


def conv_bn_relu_kernel(w_ref, x_ref, g_ref, b_ref, o_ref,
                        sum_ref, ssq_ref, *, m_true):
    # w_ref : (Cout, Kp)          packed conv weights (K = KH*KW*Cin, zero-padded)
    # x_ref : (Kp, TM)            im2col tile, lanes = flattened (n,h,w) positions
    # g_ref, b_ref : (Cout, 1)    BN gamma / beta (column vectors)
    # o_ref : (Cout, TM)          lane-dense output tile
    # sum_ref, ssq_ref : (Cout,1) f32 scratch, persists across grid steps
    phase = pl.program_id(0)     # 0: conv + stats, 1: conv + normalize + relu
    j = pl.program_id(1)         # which M tile

    # Single MXU matmul per tile; the lane dim (TM) is 128-dense.
    acc = jnp.dot(w_ref[...], x_ref[...], preferred_element_type=jnp.float32)

    @pl.when(jnp.logical_and(phase == 0, j == 0))
    def _init():
        sum_ref[...] = jnp.zeros_like(sum_ref)
        ssq_ref[...] = jnp.zeros_like(ssq_ref)

    @pl.when(phase == 0)
    def _stats():
        # One-pass batch statistics.  Zero-padded M columns give exactly-zero
        # conv outputs (no bias inside the kernel), so they do not perturb the
        # sums; the true element count is divided out in phase 1.
        sum_ref[...] += jnp.sum(acc, axis=1, keepdims=True)
        ssq_ref[...] += jnp.sum(acc * acc, axis=1, keepdims=True)
        o_ref[...] = acc.astype(o_ref.dtype)   # placeholder; overwritten in phase 1

    @pl.when(phase == 1)
    def _normalize():
        inv_m = 1.0 / float(m_true)
        mean = sum_ref[...] * inv_m
        var = jnp.maximum(ssq_ref[...] * inv_m - mean * mean, 0.0)
        scale = g_ref[...] * lax.rsqrt(var + BN_EPS)
        shift = b_ref[...] - mean * scale
        o_ref[...] = jnp.maximum(acc * scale + shift, 0.0).astype(o_ref.dtype)


def layer_forward(x_nchw, w_oihw, bias, gamma, beta, *, tile_m=256):
    """Forward pass of `Layer` (conv3x3 s1 p1 + BN(train) + ReLU); NCHW in/out.

    `bias` is accepted for API parity with nn.Conv2d but intentionally not used
    inside the fused kernel: a per-channel constant added before training-mode
    BatchNorm is exactly cancelled by the batch-mean subtraction.
    """
    del bias
    N, Cin, H, W = x_nchw.shape
    Cout, _, KH, KW = w_oihw.shape
    pad = 1

    M = N * H * W
    K = KH * KW * Cin

    # ---- wrapper glue: spatial pad + transposed im2col (K rows, M lanes) ----
    xp = jnp.pad(x_nchw, ((0, 0), (0, 0), (pad, pad), (pad, pad)))
    taps = []
    for kh in range(KH):
        for kw in range(KW):
            taps.append(xp[:, :, kh:kh + H, kw:kw + W])      # (N, Cin, H, W)
    pat = jnp.stack(taps, axis=0)                            # (KH*KW, N, Cin, H, W)
    pat = jnp.transpose(pat, (0, 2, 1, 3, 4))                # (KH*KW, Cin, N, H, W)
    rhs = pat.reshape(K, M).astype(jnp.float32)              # (K, M)

    # (Cout, Cin, KH, KW) -> (Cout, KH*KW*Cin), K ordered as (kh, kw, cin)
    lhs = jnp.transpose(w_oihw, (0, 2, 3, 1)).reshape(Cout, K).astype(jnp.float32)

    # ---- alignment: K -> multiple of 8 (sublanes), M -> multiple of tile (lanes) ----
    tile_m = min(tile_m, ((M + 127) // 128) * 128)
    Kp = ((K + 7) // 8) * 8
    Mp = ((M + tile_m - 1) // tile_m) * tile_m
    rhs = jnp.pad(rhs, ((0, Kp - K), (0, Mp - M)))
    lhs = jnp.pad(lhs, ((0, 0), (0, Kp - K)))

    g2 = gamma.reshape(Cout, 1).astype(jnp.float32)
    b2 = beta.reshape(Cout, 1).astype(jnp.float32)

    n_m_blocks = Mp // tile_m
    kernel = functools.partial(conv_bn_relu_kernel, m_true=M)

    out2d = pl.pallas_call(
        kernel,
        out_shape=jax.ShapeDtypeStruct((Cout, Mp), x_nchw.dtype),
        grid_spec=pltpu.PrefetchScalarGridSpec(
            num_scalar_prefetch=0,
            grid=(2, n_m_blocks),                         # (phase, M tile)
            in_specs=[
                pl.BlockSpec((Cout, Kp), lambda p, j: (0, 0)),     # weights
                pl.BlockSpec((Kp, tile_m), lambda p, j: (0, j)),   # im2col tile
                pl.BlockSpec((Cout, 1), lambda p, j: (0, 0)),      # gamma
                pl.BlockSpec((Cout, 1), lambda p, j: (0, 0)),      # beta
            ],
            out_specs=pl.BlockSpec((Cout, tile_m), lambda p, j: (0, j)),
            scratch_shapes=[pltpu.VMEM((Cout, 1), jnp.float32),    # sum
                            pltpu.VMEM((Cout, 1), jnp.float32)],   # sum of squares
        ),
        # TODO(synk): marking the M axis "parallel" (v7x megacore) would need a
        # cross-core combine of the BN sum/sumsq scratch; kept "arbitrary".
        compiler_params=pltpu.CompilerParams(
            dimension_semantics=("arbitrary", "arbitrary"),
            vmem_limit_bytes=32 * 1024 * 1024,
        ),
    )(lhs, rhs, g2, b2)

    # (Cout, M) -> (N, Cout, H, W)
    out = out2d[:, :M].reshape(Cout, N, H, W)
    return jnp.transpose(out, (1, 0, 2, 3))


def reference_forward(x_nchw, w_oihw, bias, gamma, beta):
    """Plain-JAX reference matching PyTorch semantics (BN in training mode)."""
    out = lax.conv_general_dilated(
        x_nchw, w_oihw, window_strides=(1, 1), padding=((1, 1), (1, 1)),
        dimension_numbers=("NCHW", "OIHW", "NCHW"))
    out = out + bias[None, :, None, None]
    mean = jnp.mean(out, axis=(0, 2, 3), keepdims=True)
    var = jnp.mean(jnp.square(out - mean), axis=(0, 2, 3), keepdims=True)
    y = (out - mean) * lax.rsqrt(var + BN_EPS)
    y = y * gamma[None, :, None, None] + beta[None, :, None, None]
    return jnp.maximum(y, 0.0)


if __name__ == "__main__":
    in_ch, out_ch, ksize = 4, 8, 3
    N, H, W = 2, 16, 16

    key = jax.random.PRNGKey(0)
    k_x, k_w, k_b = jax.random.split(key, 3)

    # Input (NCHW, like PyTorch)
    x = jax.random.normal(k_x, (N, in_ch, H, W), dtype=jnp.float32)

    # Conv weight: xavier_uniform_ (fan_in = in_ch*k*k, fan_out = out_ch*k*k)
    fan_in = in_ch * ksize * ksize
    fan_out = out_ch * ksize * ksize
    xavier_bound = (6.0 / (fan_in + fan_out)) ** 0.5
    w = jax.random.uniform(k_w, (out_ch, in_ch, ksize, ksize),
                           minval=-xavier_bound, maxval=xavier_bound,
                           dtype=jnp.float32)
    # Conv bias: PyTorch default uniform(-1/sqrt(fan_in), 1/sqrt(fan_in))
    b_bound = 1.0 / (fan_in ** 0.5)
    bias = jax.random.uniform(k_b, (out_ch,), minval=-b_bound, maxval=b_bound,
                              dtype=jnp.float32)
    # BatchNorm affine params: gamma=1, beta=0
    gamma = jnp.ones((out_ch,), dtype=jnp.float32)
    beta = jnp.zeros((out_ch,), dtype=jnp.float32)

    layer = jax.jit(layer_forward)
    out = layer(x, w, bias, gamma, beta)
    out = jax.block_until_ready(out)

    ref = reference_forward(x, w, bias, gamma, beta)
    assert out.shape == (N, out_ch, H, W)
    assert jnp.allclose(out, ref, atol=1e-4, rtol=1e-4), "mismatch vs reference"

    print("KERNEL_OK")
</pallas_src>

<mosaic_0001>
module attributes {stable_mosaic.version = 11 : i64} {
  func.func @conv_bn_relu_kernel(%arg0: i32, %arg1: i32, %arg2: memref<8x40xf32, #tpu.memory_space<vmem>>, %arg3: memref<40x256xf32, #tpu.memory_space<vmem>>, %arg4: memref<8x1xf32, #tpu.memory_space<vmem>>, %arg5: memref<8x1xf32, #tpu.memory_space<vmem>>, %arg6: memref<8x256xf32, #tpu.memory_space<vmem>>, %arg7: memref<8x1xf32, #tpu.memory_space<vmem>>, %arg8: memref<8x1xf32, #tpu.memory_space<vmem>>) attributes {dimension_semantics = [#tpu.dimension_semantics<arbitrary>, #tpu.dimension_semantics<arbitrary>], iteration_bounds = array<i64: 2, 2>, scalar_prefetch = 0 : i64, scratch_operands = 2 : i64, tpu.core_type = #tpu.core_type<tc>, window_params = [{pipeline_mode = #tpu.pipeline_mode<synchronous>, transform_indices = @transform_0, window_bounds = array<i64: 8, 40>}, {transform_indices = @transform_1, window_bounds = array<i64: 40, 256>}, {pipeline_mode = #tpu.pipeline_mode<synchronous>, transform_indices = @transform_2, window_bounds = array<i64: 8, 1>}, {pipeline_mode = #tpu.pipeline_mode<synchronous>, transform_indices = @transform_3, window_bounds = array<i64: 8, 1>}, {transform_indices = @transform_4, window_bounds = array<i64: 8, 256>}]} {
    %c0 = arith.constant 0 : index
    %c0_0 = arith.constant 0 : index
    %0 = vector.load %arg2[%c0, %c0_0] : memref<8x40xf32, #tpu.memory_space<vmem>>, vector<8x40xf32>
    %c0_1 = arith.constant 0 : index
    %c0_2 = arith.constant 0 : index
    %1 = vector.load %arg3[%c0_1, %c0_2] : memref<40x256xf32, #tpu.memory_space<vmem>>, vector<40x256xf32>
    %cst = arith.constant dense<0.000000e+00> : vector<8x256xf32>
    %2 = tpu.matmul %0, %1, %cst {dimension_numbers = #tpu.dot_dimension_numbers<[1], [0], [0], [1], [0, 0, 1, 1], [], []>} : vector<8x40xf32>, vector<40x256xf32>, vector<8x256xf32> -> vector<8x256xf32>
    %c0_i32 = arith.constant 0 : i32
    %3 = arith.cmpi eq, %arg0, %c0_i32 : i32
    %c0_i32_3 = arith.constant 0 : i32
    %4 = arith.cmpi eq, %arg1, %c0_i32_3 : i32
    %5 = arith.andi %3, %4 : i1
    %6 = arith.extui %5 : i1 to i32
    %c0_i32_4 = arith.constant 0 : i32
    %7 = arith.cmpi ne, %6, %c0_i32_4 : i32
    scf.if %7 {
      %cst_8 = arith.constant 0.000000e+00 : f32
      %14 = vector.broadcast %cst_8 : f32 to vector<8x1xf32>
      %c0_9 = arith.constant 0 : index
      %c0_10 = arith.constant 0 : index
      %15 = vector.load %arg7[%c0_9, %c0_10] : memref<8x1xf32, #tpu.memory_space<vmem>>, vector<8x1xf32>
      tpu.vector_store %arg7[%c0_9, %c0_10], %14 {strides = array<i32>} : memref<8x1xf32, #tpu.memory_space<vmem>>, vector<8x1xf32>,
      %cst_11 = arith.constant 0.000000e+00 : f32
      %16 = vector.broadcast %cst_11 : f32 to vector<8x1xf32>
      %c0_12 = arith.constant 0 : index
      %c0_13 = arith.constant 0 : index
      %17 = vector.load %arg8[%c0_12, %c0_13] : memref<8x1xf32, #tpu.memory_space<vmem>>, vector<8x1xf32>
      tpu.vector_store %arg8[%c0_12, %c0_13], %16 {strides = array<i32>} : memref<8x1xf32, #tpu.memory_space<vmem>>, vector<8x1xf32>,
    } else {
    }
    %c0_i32_5 = arith.constant 0 : i32
    %8 = arith.cmpi eq, %arg0, %c0_i32_5 : i32
    %9 = arith.extui %8 : i1 to i32
    %c0_i32_6 = arith.constant 0 : i32
    %10 = arith.cmpi ne, %9, %c0_i32_6 : i32
    scf.if %10 {
      %c0_8 = arith.constant 0 : index
      %c0_9 = arith.constant 0 : index
      %14 = vector.load %arg7[%c0_8, %c0_9] : memref<8x1xf32, #tpu.memory_space<vmem>>, vector<8x1xf32>
      %cst_10 = arith.constant dense<0.000000e+00> : vector<8xf32>
      %15 = vector.multi_reduction <add>, %2, %cst_10 [1] : vector<8x256xf32> to vector<8xf32>
      %16 = vector.shape_cast %15 : vector<8xf32> to vector<8x1xf32>
      %17 = arith.addf %14, %16 : vector<8x1xf32>
      %c0_11 = arith.constant 0 : index
      %c0_12 = arith.constant 0 : index
      %18 = vector.load %arg7[%c0_11, %c0_12] : memref<8x1xf32, #tpu.memory_space<vmem>>, vector<8x1xf32>
      tpu.vector_store %arg7[%c0_11, %c0_12], %17 {strides = array<i32>} : memref<8x1xf32, #tpu.memory_space<vmem>>, vector<8x1xf32>,
      %c0_13 = arith.constant 0 : index
      %c0_14 = arith.constant 0 : index
      %19 = vector.load %arg8[%c0_13, %c0_14] : memref<8x1xf32, #tpu.memory_space<vmem>>, vector<8x1xf32>
      %20 = arith.mulf %2, %2 : vector<8x256xf32>
      %cst_15 = arith.constant dense<0.000000e+00> : vector<8xf32>
      %21 = vector.multi_reduction <add>, %20, %cst_15 [1] : vector<8x256xf32> to vector<8xf32>
      %22 = vector.shape_cast %21 : vector<8xf32> to vector<8x1xf32>
      %23 = arith.addf %19, %22 : vector<8x1xf32>
      %c0_16 = arith.constant 0 : index
      %c0_17 = arith.constant 0 : index
      %24 = vector.load %arg8[%c0_16, %c0_17] : memref<8x1xf32, #tpu.memory_space<vmem>>, vector<8x1xf32>
      tpu.vector_store %arg8[%c0_16, %c0_17], %23 {strides = array<i32>} : memref<8x1xf32, #tpu.memory_space<vmem>>, vector<8x1xf32>,
      %c0_18 = arith.constant 0 : index
      %c0_19 = arith.constant 0 : index
      %25 = vector.load %arg6[%c0_18, %c0_19] : memref<8x256xf32, #tpu.memory_space<vmem>>, vector<8x256xf32>
      tpu.vector_store %arg6[%c0_18, %c0_19], %2 {strides = array<i32>} : memref<8x256xf32, #tpu.memory_space<vmem>>, vector<8x256xf32>,
    } else {
    }
    %c1_i32 = arith.constant 1 : i32
    %11 = arith.cmpi eq, %arg0, %c1_i32 : i32
    %12 = arith.extui %11 : i1 to i32
    %c0_i32_7 = arith.constant 0 : i32
    %13 = arith.cmpi ne, %12, %c0_i32_7 : i32
    scf.if %13 {
      %c0_8 = arith.constant 0 : index
      %c0_9 = arith.constant 0 : index
      %14 = vector.load %arg7[%c0_8, %c0_9] : memref<8x1xf32, #tpu.memory_space<vmem>>, vector<8x1xf32>
      %cst_10 = arith.constant 0.001953125 : f32
      %15 = vector.broadcast %cst_10 : f32 to vector<8x1xf32>
      %16 = arith.mulf %14, %15 : vector<8x1xf32>
      %c0_11 = arith.constant 0 : index
      %c0_12 = arith.constant 0 : index
      %17 = vector.load %arg8[%c0_11, %c0_12] : memref<8x1xf32, #tpu.memory_space<vmem>>, vector<8x1xf32>
      %cst_13 = arith.constant 0.001953125 : f32
      %18 = vector.broadcast %cst_13 : f32 to vector<8x1xf32>
      %19 = arith.mulf %17, %18 : vector<8x1xf32>
      %20 = arith.mulf %16, %16 : vector<8x1xf32>
      %21 = arith.subf %19, %20 : vector<8x1xf32>
      %cst_14 = arith.constant 0.000000e+00 : f32
      %22 = vector.broadcast %cst_14 : f32 to vector<8x1xf32>
      %23 = arith.maximumf %21, %22 : vector<8x1xf32>
      %c0_15 = arith.constant 0 : index
      %c0_16 = arith.constant 0 : index
      %24 = vector.load %arg4[%c0_15, %c0_16] : memref<8x1xf32, #tpu.memory_space<vmem>>, vector<8x1xf32>
      %cst_17 = arith.constant 9.99999974E-6 : f32
      %25 = vector.broadcast %cst_17 : f32 to vector<8x1xf32>
      %26 = arith.addf %23, %25 : vector<8x1xf32>
      %27 = math.rsqrt %26 : vector<8x1xf32>
      %28 = arith.mulf %24, %27 : vector<8x1xf32>
      %c0_18 = arith.constant 0 : index
      %c0_19 = arith.constant 0 : index
      %29 = vector.load %arg5[%c0_18, %c0_19] : memref<8x1xf32, #tpu.memory_space<vmem>>, vector<8x1xf32>
      %30 = arith.mulf %16, %28 : vector<8x1xf32>
      %31 = arith.subf %29, %30 : vector<8x1xf32>
      %32 = vector.broadcast %28 : vector<8x1xf32> to vector<8x256xf32>
      %33 = arith.mulf %2, %32 : vector<8x256xf32>
      %34 = vector.broadcast %31 : vector<8x1xf32> to vector<8x256xf32>
      %35 = arith.addf %33, %34 : vector<8x256xf32>
      %cst_20 = arith.constant 0.000000e+00 : f32
      %36 = vector.broadcast %cst_20 : f32 to vector<8x256xf32>
      %37 = arith.maximumf %35, %36 : vector<8x256xf32>
      %c0_21 = arith.constant 0 : index
      %c0_22 = arith.constant 0 : index
      %38 = vector.load %arg6[%c0_21, %c0_22] : memref<8x256xf32, #tpu.memory_space<vmem>>, vector<8x256xf32>
      tpu.vector_store %arg6[%c0_21, %c0_22], %37 {strides = array<i32>} : memref<8x256xf32, #tpu.memory_space<vmem>>, vector<8x256xf32>,
    } else {
    }
    return
  }
  func.func @transform_0(%arg0: i32, %arg1: i32) -> (i32, i32) {
    %c0_i32 = arith.constant 0 : i32
    %c0_i32_0 = arith.constant 0 : i32
    %c0_i32_1 = arith.constant 0 : i32
    return %c0_i32, %c0_i32_0 : i32, i32
  }
  func.func @transform_1(%arg0: i32, %arg1: i32) -> (i32, i32) {
    %c0_i32 = arith.constant 0 : i32
    %c0_i32_0 = arith.constant 0 : i32
    return %c0_i32, %arg1 : i32, i32
  }
  func.func @transform_2(%arg0: i32, %arg1: i32) -> (i32, i32) {
    %c0_i32 = arith.constant 0 : i32
    %c0_i32_0 = arith.constant 0 : i32
    %c0_i32_1 = arith.constant 0 : i32
    return %c0_i32, %c0_i32_0 : i32, i32
  }
  func.func @transform_3(%arg0: i32, %arg1: i32) -> (i32, i32) {
    %c0_i32 = arith.constant 0 : i32
    %c0_i32_0 = arith.constant 0 : i32
    %c0_i32_1 = arith.constant 0 : i32
    return %c0_i32, %c0_i32_0 : i32, i32
  }
  func.func @transform_4(%arg0: i32, %arg1: i32) -> (i32, i32) {
    %c0_i32 = arith.constant 0 : i32
    %c0_i32_0 = arith.constant 0 : i32
    return %c0_i32, %arg1 : i32, i32
  }
}

</mosaic_0001>

<llo_original>
// kernel: layer_forward.1
$region0: #{layer_forward.1}
  #allocation0 [shape = 'u32[]', space=smem, size = 0x4, offset = 0x4, fixed_abs, tag = 'smem constant byte address 0x4 - core index']
  #allocation1 [shape = 'u32[144,128]{1,0:T(1,128)}', space=vmem, size = 0x12000, scoped, tag = 'internal scratch']
  #allocation2 [shape = 'f32[8,1]{1,0:T(8,128)}', space=vmem, size = 0x1000, scoped, tag = 'scratch operand']
  #allocation3 [shape = 'f32[8,1]{1,0:T(8,128)}', space=vmem, size = 0x1000, scoped, tag = 'scratch operand']
  %s0 = inlined_call_operand.vmem [shape: f32[8,40], index: 0, kind: input, shape index: {}]
  %s1 = inlined_call_operand.vmem [shape: f32[40,512], index: 1, kind: input, shape index: {}]
  %s2 = inlined_call_operand.vmem [shape: f32[8,1], index: 2, kind: input, shape index: {}]
  %s3 = inlined_call_operand.vmem [shape: f32[8,1], index: 3, kind: input, shape index: {}]
  %s4 = inlined_call_operand.vmem [shape: f32[8,512], index: 4, kind: output, shape index: {}]
  %s5 = sld [smem:[#allocation0]]
  $region84: #{layer_forward.1} parent=0
    _
  %s7 = ssub.s32 1, %s5
  %s8 = scalar_select 0, %s7, %s5
  $region1: #{layer_forward.1} parent=0
    #allocation4 [shape = 'u8[81920]{0}', space=vmem, size = 0x14000, scoped, tag = 'input window, operand 1']
    loop: start=0, step=1, limit=6
    $region2: #{layer_forward.1} parent=1 // loop_pre_header
      _
    $region3: #{layer_forward.1} parent=1 // loop_header
      %s10 = sphi 0, %s14
      %p11 = scmp.ge.s32.totalorder %s10, 6
      %s17 = sphi 0, %s29
      %s18 = sphi 0, %s25
      %s19 = sphi 0, %s17
      %s20 = sphi 0, %s18
      %s21 = sphi 0, %s19
      %s22 = sphi 0, %s20
      %s30 = sphi 0, %s30
      %s32 = sphi 0, %s30
      %s33 = sphi 0, %s32
      %s47 = sphi 0, %s33
      %s53 = sphi 0, %s55
      %s56 = sphi 0, %s53
      %s57 = sphi 0, %s56
      %s73 = sphi 0, %s57
      %s77 = sphi 0, %s77
      %s79 = sphi 0, %s77
      %s80 = sphi 0, %s79
      %s94 = sphi 0, %s80
      %s98 = sphi 0, %s98
      %s100 = sphi 0, %s98
      %s101 = sphi 0, %s100
      %s115 = sphi 0, %s101
      %s121 = sphi 0, %s123
      %s124 = sphi 0, %s121
      %s125 = sphi 0, %s124
      %s141 = sphi 0, %s125
    $region4: #{layer_forward.1} parent=1 // loop_header_branch
      %13 = sbr.rel (%p11) target = $region8
    $region5: #{layer_forward.1} parent=1 // loop_body
      %s15 = ssub.s32 %s10, 1
      %s16 = ssub.s32 %s10, 2
      %s23 = sadd.s32 1, %s18
      %p24 = scmp.ge.s32.totalorder %s23, 2
      %s25 = scalar_select %p24, 0, %s23
      %s26 = sadd.s32 1, %s17
      %s27 = scalar_select %p24, %s26, %s17
      %p28 = scmp.ge.s32.totalorder %s27, 2
      %s29 = scalar_select %p28, 0, %s27
      %s31 = sadd.s32 %s30, 1
      %p34 = scmp.eq.s32.totalorder %s10, 3
      %p35 = scmp.ne.s32.totalorder %s30, %s32
      %p36 = scmp.eq.s32.totalorder %s10, 0
      %p37 = por %p35, %p36
      %p38 = scmp.ne.s32.totalorder %s30, %s32
      %p39 = scmp.eq.s32.totalorder %s15, 3
      %p40 = por %p38, %p39
      %p41 = scmp.ne.s32.totalorder %s32, %s33
      %p42 = scmp.eq.s32.totalorder %s15, 0
      %p43 = por %p41, %p42
      %p44 = scmp.ne.s32.totalorder %s32, %s33
      %p45 = scmp.eq.s32.totalorder %s16, 3
      %p46 = por %p44, %p45
      %p48 = scmp.ne.s32.totalorder %s33, %s47
      %p49 = scmp.eq.s32.totalorder %s16, 0
      %p50 = por %p48, %p49
      %s51 = ssub.s32 %s18, %s25
      %p52 = scmp.eq.s32.totalorder %s51, 0
      %s54 = sadd.s32 %s53, 1
      %s55 = scalar_select %p52, %s53, %s54
      %p58 = pneg %p52
      %p59 = scmp.eq.s32.totalorder %s10, 3
      %p60 = por %p58, %p59
      %p61 = scmp.ne.s32.totalorder %s53, %s56
      %p62 = scmp.eq.s32.totalorder %s10, 0
      %p63 = por %p61, %p62
      %p64 = scmp.ne.s32.totalorder %s53, %s56
      %p65 = scmp.eq.s32.totalorder %s15, 3
      %p66 = por %p64, %p65
      %p67 = scmp.ne.s32.totalorder %s56, %s57
      %p68 = scmp.eq.s32.totalorder %s15, 0
      %p69 = por %p67, %p68
      %p70 = scmp.ne.s32.totalorder %s56, %s57
      %p71 = scmp.eq.s32.totalorder %s16, 3
      %p72 = por %p70, %p71
      %p74 = scmp.ne.s32.totalorder %s57, %s73
      %p75 = scmp.eq.s32.totalorder %s16, 0
      %p76 = por %p74, %p75
      %s78 = sadd.s32 %s77, 1
      %p81 = scmp.eq.s32.totalorder %s10, 3
      %p82 = scmp.ne.s32.totalorder %s77, %s79
      %p83 = scmp.eq.s32.totalorder %s10, 0
      %p84 = por %p82, %p83
      %p85 = scmp.ne.s32.totalorder %s77, %s79
      %p86 = scmp.eq.s32.totalorder %s15, 3
      %p87 = por %p85, %p86
      %p88 = scmp.ne.s32.totalorder %s79, %s80
      %p89 = scmp.eq.s32.totalorder %s15, 0
      %p90 = por %p88, %p89
      %p91 = scmp.ne.s32.totalorder %s79, %s80
      %p92 = scmp.eq.s32.totalorder %s16, 3
      %p93 = por %p91, %p92
      %p95 = scmp.ne.s32.totalorder %s80, %s94
      %p96 = scmp.eq.s32.totalorder %s16, 0
      %p97 = por %p95, %p96
      %s99 = sadd.s32 %s98, 1
      %p102 = scmp.eq.s32.totalorder %s10, 3
      %p103 = scmp.ne.s32.totalorder %s98, %s100
      %p104 = scmp.eq.s32.totalorder %s10, 0
      %p105 = por %p103, %p104
      %p106 = scmp.ne.s32.totalorder %s98, %s100
      %p107 = scmp.eq.s32.totalorder %s15, 3
      %p108 = por %p106, %p107
      %p109 = scmp.ne.s32.totalorder %s100, %s101
      %p110 = scmp.eq.s32.totalorder %s15, 0
      %p111 = por %p109, %p110
      %p112 = scmp.ne.s32.totalorder %s100, %s101
      %p113 = scmp.eq.s32.totalorder %s16, 3
      %p114 = por %p112, %p113
      %p116 = scmp.ne.s32.totalorder %s101, %s115
      %p117 = scmp.eq.s32.totalorder %s16, 0
      %p118 = por %p116, %p117
      %s119 = ssub.s32 %s18, %s25
      %p120 = scmp.eq.s32.totalorder %s119, 0
      %s122 = sadd.s32 %s121, 1
      %s123 = scalar_select %p120, %s121, %s122
      %p126 = pneg %p120
      %p127 = scmp.eq.s32.totalorder %s10, 3
      %p128 = por %p126, %p127
      %p129 = scmp.ne.s32.totalorder %s121, %s124
      %p130 = scmp.eq.s32.totalorder %s10, 0
      %p131 = por %p129, %p130
      %p132 = scmp.ne.s32.totalorder %s121, %s124
      %p133 = scmp.eq.s32.totalorder %s15, 3
      %p134 = por %p132, %p133
      %p135 = scmp.ne.s32.totalorder %s124, %s125
      %p136 = scmp.eq.s32.totalorder %s15, 0
      %p137 = por %p135, %p136
      %p138 = scmp.ne.s32.totalorder %s124, %s125
      %p139 = scmp.eq.s32.totalorder %s16, 3
      %p140 = por %p138, %p139
      %p142 = scmp.ne.s32.totalorder %s125, %s141
      %p143 = scmp.eq.s32.totalorder %s16, 0
      %p144 = por %p142, %p143
      %p145 = scmp.le.s32.totalorder 1, %s10
      %p146 = scmp.lt.s32.totalorder %s10, 5
      %p147 = pnand %p145, %p146
      %p148 = pneg %p147
      // Predicated region
      $region9: #{layer_forward.1} parent=5 // pred_check
        _
      $region10: #{layer_forward.1} parent=5 // pred_check_branch
        %150 = sbr.rel (%p147) target = $region12
      $region11: #{layer_forward.1} parent=5 // pred_region
        %s151 = ssub.s32 %s10, 1
        // Predicated region
        $region13: #{layer_forward.1} parent=11 // pred_check
          %p152 = pneg %p43
        $region14: #{layer_forward.1} parent=11 // pred_check_branch
          %154 = sbr.rel (%p152) target = $region16
        $region15: #{layer_forward.1} parent=11 // pred_region
          _
        $region16: #{layer_forward.1} parent=11 // pred_fallthru
          _
        // Predicated region
        $region17: #{layer_forward.1} parent=11 // pred_check
          %p155 = pneg %p90
        $region18: #{layer_forward.1} parent=11 // pred_check_branch
          %157 = sbr.rel (%p155) target = $region20
        $region19: #{layer_forward.1} parent=11 // pred_region
          _
        $region20: #{layer_forward.1} parent=11 // pred_fallthru
          _
        // Predicated region
        $region21: #{layer_forward.1} parent=11 // pred_check
          %p158 = pneg %p111
        $region22: #{layer_forward.1} parent=11 // pred_check_branch
          %160 = sbr.rel (%p158) target = $region24
        $region23: #{layer_forward.1} parent=11 // pred_region
          _
        $region24: #{layer_forward.1} parent=11 // pred_fallthru
          _
      $region12: #{layer_forward.1} parent=5 // pred_fallthru
        _
      %p161 = scmp.lt.s32.totalorder %s10, 4
      // Predicated region
      $region25: #{layer_forward.1} parent=5 // pred_check
        %p162 = pneg %p161
      $region26: #{layer_forward.1} parent=5 // pred_check_branch
        %164 = sbr.rel (%p162) target = $region28
      $region27: #{layer_forward.1} parent=5 // pred_region
        // Predicated region
        $region29: #{layer_forward.1} parent=27 // pred_check
          %p165 = pneg %p63
        $region30: #{layer_forward.1} parent=27 // pred_check_branch
          %167 = sbr.rel (%p165) target = $region32
        $region31: #{layer_forward.1} parent=27 // pred_region
          %s168 = sand.u32 %s53, 1
          %s169 = sand.u32 %s53, 1
          %s170 = smul.addr %s169, 80
          %s171 = scalar_lea.vmem [#allocation4], %s170
          %s172 = smul.u32 2, %s18
          %s173 = smul.addr %s172, 8
          %s174 = scalar_lea.vmem %s1, %s173
          // Predicated region
          $region33: #{layer_forward.1} parent=31 // pred_check
            _
          $region34: #{layer_forward.1} parent=31 // pred_check_branch
            %176 = sbr.rel (0) target = $region36
          $region35: #{layer_forward.1} parent=31 // pred_region
            // Predicated region
            $region37: #{layer_forward.1} parent=35 // pred_check
              _
            $region38: #{layer_forward.1} parent=35 // pred_check_branch
              %178 = sbr.rel (0) target = $region40
            $region39: #{layer_forward.1} parent=35 // pred_region
              loop: start=0, step=1, limit=1
              $region41: #{layer_forward.1} parent=39 // loop_pre_header
                _
              $region42: #{layer_forward.1} parent=39 // loop_header
                %s180 = sphi 0, %s184
                %p181 = scmp.ge.s32.totalorder %s180, 1
                %s185 = sphi %s174, %s174
                %s186 = sphi %s171, %s171
              $region43: #{layer_forward.1} parent=39 // loop_header_branch
                %183 = sbr.rel (%p181) target = $region47
              $region44: #{layer_forward.1} parent=39 // loop_body
                %v187 = vld [vmem:[%s185] sm:$0xff]
                %188 = vst [vmem:[%s186] sm:$0xff] %v187
                %v189 = vld [vmem:[%s185 + $0x8] sm:$0xff]
                %190 = vst [vmem:[%s186 + $0x8] sm:$0xff] %v189
                %v191 = vld [vmem:[%s185 + $0x20] sm:$0xff]
                %192 = vst [vmem:[%s186 + $0x10] sm:$0xff] %v191
                %v193 = vld [vmem:[%s185 + $0x28] sm:$0xff]
                %194 = vst [vmem:[%s186 + $0x18] sm:$0xff] %v193
                %v195 = vld [vmem:[%s185 + $0x40] sm:$0xff]
                %196 = vst [vmem:[%s186 + $0x20] sm:$0xff] %v195
                %v197 = vld [vmem:[%s185 + $0x48] sm:$0xff]
                %198 = vst [vmem:[%s186 + $0x28] sm:$0xff] %v197
                %v199 = vld [vmem:[%s185 + $0x60] sm:$0xff]
                %200 = vst [vmem:[%s186 + $0x30] sm:$0xff] %v199
                %v201 = vld [vmem:[%s185 + $0x68] sm:$0xff]
                %202 = vst [vmem:[%s186 + $0x38] sm:$0xff] %v201
                %v203 = vld [vmem:[%s185 + $0x80] sm:$0xff]
                %204 = vst [vmem:[%s186 + $0x40] sm:$0xff] %v203
                %v205 = vld [vmem:[%s185 + $0x88] sm:$0xff]
                %206 = vst [vmem:[%s186 + $0x48] sm:$0xff] %v205
              $region45: #{layer_forward.1} parent=39 // loop_footer
                %s184 = sadd.s32 1, %s180
              $region46: #{layer_forward.1} parent=39 // loop_footer_branch
                %179 = sbr.rel target = $region42
              $region47: #{layer_forward.1} parent=39 // loop_exit
                _
            $region40: #{layer_forward.1} parent=35 // pred_fallthru
              _
            // Predicated region
            $region48: #{layer_forward.1} parent=35 // pred_check
              _
            $region49: #{layer_forward.1} parent=35 // pred_check_branch
              %208 = sbr.rel target = $region51
            $region50: #{layer_forward.1} parent=35 // pred_region
              _
            $region51: #{layer_forward.1} parent=35 // pred_fallthru
              _
          $region36: #{layer_forward.1} parent=31 // pred_fallthru
            _
          %209 = vnop
        $region32: #{layer_forward.1} parent=27 // pred_fallthru
          _
      $region28: #{layer_forward.1} parent=5 // pred_fallthru
        _
      %p210 = scmp.le.s32.totalorder 1, %s10
      %p211 = scmp.lt.s32.totalorder %s10, 5
      %p212 = pnand %p210, %p211
      %p213 = pneg %p212
      // Predicated region
      $region52: #{layer_forward.1} parent=5 // pred_check
        _
      $region53: #{layer_forward.1} parent=5 // pred_check_branch
        %215 = sbr.rel (%p212) target = $region55
      $region54: #{layer_forward.1} parent=5 // pred_region
        %s216 = ssub.s32 %s10, 1
        %s217 = sand.u32 %s56, 1
        %s218 = sand.u32 %s56, 1
        %s219 = smul.addr %s218, 80
        %s220 = scalar_lea.vmem [#allocation4], %s219
        // Predicated region
        $region56: #{layer_forward.1} parent=54 // pred_check
          %p221 = pneg %p69
        $region57: #{layer_forward.1} parent=54 // pred_check_branch
          %223 = sbr.rel (%p221) target = $region59
        $region58: #{layer_forward.1} parent=54 // pred_region
          _
        $region59: #{layer_forward.1} parent=54 // pred_fallthru
          _
        %p224 = pneg %p43
        %p225 = pneg %p40
        %s226 = sand.u32 %s56, 1
        %s227 = sand.u32 %s56, 1
        %s228 = smul.addr %s227, 80
        %s229 = scalar_lea.vmem [#allocation4], %s228
        %p230 = pneg %p69
        %p231 = pneg %p66
        %p232 = pneg %p90
        %p233 = pneg %p87
        %p234 = pneg %p111
        %p235 = pneg %p108
        %p236 = pneg %p137
        %p237 = pneg %p134
        %s238 = smul.u32 2, %s20
        %p239 = scmp.lt.s32.totalorder %s238, 3
        %s240 = scalar_select %p239, %s238, 3
        %s241 = smul.addr %s240, 8
        %s242 = scalar_lea.vmem %s4, %s241
        %s243 = smul.u32 2, %s20
        %s244 = smul.u32 2, %s20
        %p245 = scmp.lt.s32.totalorder %s244, 3
        %s246 = scalar_select %p245, %s244, 3
        %s247 = smul.addr %s246, 8
        %s248 = scalar_lea.vmem %s4, %s247
        %s249 = smul.u32 2, %s20
        %v250 = vld [vmem:[%s0] sm:$0xff]
        %v251 = vld [vmem:[%s220] sm:$0xff]
        %v252 = vld [vmem:[%s220 + $0x8] sm:$0xff]
        %v253 = vld [vmem:[%s220 + $0x10] sm:$0xff]
        %v254 = vld [vmem:[%s220 + $0x18] sm:$0xff]
        %v255 = vld [vmem:[%s220 + $0x20] sm:$0xff]
        %v256 = vld [vmem:[%s220 + $0x28] sm:$0xff]
        %v257 = vld [vmem:[%s220 + $0x30] sm:$0xff]
        %v258 = vld [vmem:[%s220 + $0x38] sm:$0xff]
        %v259 = vld [vmem:[%s220 + $0x40] sm:$0xff]
        %v260 = vld [vmem:[%s220 + $0x48] sm:$0xff]
        %vm261 = vcmask 326656
        %v263 = vsel %vm261, %v250, 0
        %265 = vmatprep.subr.mxu0 %v252
        %266 = vmatpush1.msra.mxu0 %v251
        %267 = vmatprep.subr.mxu0 %v254
        %268 = vmatpush1.msra.mxu0 %v253
        %269 = vmatprep.subr.mxu0 %v256
        %270 = vmatpush1.msra.mxu0 %v255
        %271 = vmatprep.subr.mxu0 %v258
        %272 = vmatpush1.msra.mxu0 %v257
        %273 = vmatprep.subr.mxu0 %v260
        %274 = vmatpush1.msra.mxu0 %v259
        %275 = vmatprep.subr.mxu0 0.0
        %276 = vmatpush1.msra.mxu0 0.0
        %277 = vmatprep.subr.mxu0 0.0
        %278 = vmatpush1.msra.mxu0 0.0
        %279 = vmatprep.subr.mxu0 0.0
        %280 = vmatpush1.msra.mxu0 0.0
        %281 = vmatprep.subr.mxu0 0.0
        %282 = vmatpush1.msra.mxu0 0.0
        %283 = vmatprep.subr.mxu0 0.0
        %284 = vmatpush1.msra.mxu0 0.0
        %285 = vmatprep.subr.mxu0 0.0
        %286 = vmatpush1.msra.mxu0 0.0
        %287 = vmatprep.subr.mxu0 0.0
        %288 = vmatpush1.msra.mxu0 0.0
        %289 = vmatprep.subr.mxu0 0.0
        %290 = vmatpush1.msra.mxu0 0.0
        %291 = vmatprep.subr.mxu0 0.0
        %292 = vmatpush1.msra.mxu0 0.0
        %293 = vmatprep.subr.mxu0 0.0
        %294 = vmatpush1.msra.mxu0 0.0
        %295 = vmatprep.subr.mxu0 0.0
        %296 = vmatpush1.msra.mxu0 0.0
        %297 = vmatprep.subr.mxu0 0.0
        %298 = vmatpush1.msra.mxu0 0.0
        %299 = vmatprep.subr.mxu0 0.0
        %300 = vmatpush1.msra.mxu0 0.0
        %301 = vmatprep.subr.mxu0 0.0
        %302 = vmatpush1.msra.mxu0 0.0
        %303 = vmatprep.subr.mxu0 0.0
        %304 = vmatpush1.msra.mxu0 0.0
        %305 = vmatprep.subr.mxu0 0.0
        %306 = vmatpush1.msra.mxu0 0.0
        %307 = vmatprep.subr.mxu0 0.0
        %308 = vmatpush1.msra.mxu0 0.0
        %309 = vmatprep.subr.mxu0 0.0
        %310 = vmatpush1.msra.mxu0 0.0
        %311 = vmatprep.subr.mxu0 0.0
        %312 = vmatpush1.msra.mxu0 0.0
        %313 = vmatprep.subr.mxu0 0.0
        %314 = vmatpush1.msra.mxu0 0.0
        %315 = vmatprep.subr.mxu0 0.0
        %316 = vmatpush1.msra.mxu0 0.0
        %317 = vmatprep.subr.mxu0 0.0
        %318 = vmatpush1.msra.mxu0 0.0
        %319 = vmatprep.subr.mxu0 0.0
        %320 = vmatpush1.msra.mxu0 0.0
        %321 = vmatprep.subr.mxu0 0.0
        %322 = vmatpush1.msra.mxu0 0.0
        %323 = vmatprep.subr.mxu0 0.0
        %324 = vmatpush1.msra.mxu0 0.0
        %325 = vmatprep.subr.mxu0 0.0
        %326 = vmatpush1.msra.mxu0 0.0
        %327 = vmatprep.subr.mxu0 0.0
        %328 = vmatpush1.msra.mxu0 0.0
        %329 = vmatprep.mubr.f32.mxu0 0.0
        %330 = vmatmul.mubr.f32.gmra.mrb[0].mxu0 %v263
        %v331 = vpop.f32.mrb[0].mxu0
        %v332 = vadd.f32 0.0, %v331
        %v333 = vpop.f32.mrb[0].mxu0
        %v334 = vadd.f32 0.0, %v333
        %335 = vdwg.mxu0
        %p336 = scmp.eq.s32.totalorder %s19, 0
        %p337 = scmp.eq.s32.totalorder %s20, 0
        %p338 = pnand %p336, %p337
        %p339 = pneg %p338
        // Predicated region
        $region60: #{layer_forward.1} parent=54 // pred_check
          _
        $region61: #{layer_forward.1} parent=54 // pred_check_branch
          %341 = sbr.rel (%p338) target = $region63
        $region62: #{layer_forward.1} parent=54 // pred_region
          %vm342 = vcmask 7168
          %343 = vst.msk [vmem:[#allocation2] sm:$0xff] %vm342, 0.0
          %344 = vst.msk [vmem:[#allocation3] sm:$0xff] %vm342, 0.0
        $region63: #{layer_forward.1} parent=54 // pred_fallthru
          _
        // Predicated region
        $region64: #{layer_forward.1} parent=54 // pred_check
          %p345 = pneg %p336
        $region65: #{layer_forward.1} parent=54 // pred_check_branch
          %347 = sbr.rel (%p345) target = $region67
        $region66: #{layer_forward.1} parent=54 // pred_region
          %v348 = vld [vmem:[#allocation2] sm:$0xff]
          %v349 = vadd.f32 %v332, %v334
          %350 = vadd.xlane.f32.xlu0 %v349
          %v351 = vpop.xlane.xlu0 %350
          %v352 = vadd.f32 %v348, %v351
          %vm353 = vcmask 7168
          %354 = vst.msk [vmem:[#allocation2] sm:$0xff] %vm353, %v352
          %v355 = vld [vmem:[#allocation3] sm:$0xff]
          %v356 = vmul.f32 %v332, %v332
          %v357 = vmul.f32 %v334, %v334
          %v358 = vadd.f32 %v356, %v357
          %359 = vadd.xlane.f32.xlu0 %v358
          %v360 = vpop.xlane.xlu0 %359
          %v361 = vadd.f32 %v355, %v360
          %362 = vst.msk [vmem:[#allocation3] sm:$0xff] %vm353, %v361
          %363 = vst [vmem:[%s248] sm:$0xff] %v332
          %364 = vst [vmem:[%s248 + $0x8] sm:$0xff] %v334
        $region67: #{layer_forward.1} parent=54 // pred_fallthru
          _
        %p365 = scmp.eq.s32.totalorder %s19, 1
        // Predicated region
        $region68: #{layer_forward.1} parent=54 // pred_check
          %p366 = pneg %p365
        $region69: #{layer_forward.1} parent=54 // pred_check_branch
          %368 = sbr.rel (%p366) target = $region71
        $region70: #{layer_forward.1} parent=54 // pred_region
          %v369 = vld [vmem:[#allocation2] sm:$0xff]
          %v370 = vmul.f32 %v369, 0.001953125
          %v371 = vld [vmem:[#allocation3] sm:$0xff]
          %v372 = vmul.f32 %v371, 0.001953125
          %v373 = vmul.f32 %v370, %v370
          %v374 = vsub.f32 %v372, %v373
          %v375 = vmax.f32 %v374, 0.0
          %v376 = vld [vmem:[%s2] sm:$0xff]
          %v377 = vadd.f32 %v375, 1e-05
          %v378 = vrsqrt.pop %v377
          %v379 = vmul.f32 %v376, %v378
          %v380 = vld [vmem:[%s3] sm:$0xff]
          %v381 = vmul.f32 %v370, %v379
          %v382 = vsub.f32 %v380, %v381
          %384 = vset.pattern.permute.xlu0 0
          %385 = vperm.xlu0 %384, %v379
          %v386 = vpop.permute.xlu0 %385
          %v388 = vmul.f32 %v332, %v386
          %v389 = vmul.f32 %v334, %v386
          %391 = vset.pattern.permute.xlu0 0
          %392 = vperm.xlu0 %391, %v382
          %v393 = vpop.permute.xlu0 %392
          %v395 = vadd.f32 %v388, %v393
          %v396 = vadd.f32 %v389, %v393
          %v397 = vmax.f32 %v395, 0.0
          %v398 = vmax.f32 %v396, 0.0
          %399 = vst [vmem:[%s248] sm:$0xff] %v397
          %400 = vst [vmem:[%s248 + $0x8] sm:$0xff] %v398
        $region71: #{layer_forward.1} parent=54 // pred_fallthru
          _
        %s401 = smul.u32 2, %s20
        %p402 = scmp.lt.s32.totalorder %s401, 3
        %s403 = scalar_select %p402, %s401, 3
        %s404 = smul.addr %s403, 8
        %s405 = scalar_lea.vmem %s4, %s404
        // Predicated region
        $region72: #{layer_forward.1} parent=54 // pred_check
          %p406 = pneg %p134
        $region73: #{layer_forward.1} parent=54 // pred_check_branch
          %408 = sbr.rel (%p406) target = $region75
        $region74: #{layer_forward.1} parent=54 // pred_region
          %s409 = smul.u32 2, %s20
        $region75: #{layer_forward.1} parent=54 // pred_fallthru
          _
      $region55: #{layer_forward.1} parent=5 // pred_fallthru
        _
      %p410 = scmp.le.s32.totalorder 2, %s10
      // Predicated region
      $region76: #{layer_forward.1} parent=5 // pred_check
        %p411 = pneg %p410
      $region77: #{layer_forward.1} parent=5 // pred_check_branch
        %413 = sbr.rel (%p411) target = $region79
      $region78: #{layer_forward.1} parent=5 // pred_region
        %s414 = ssub.s32 %s10, 2
        // Predicated region
        $region80: #{layer_forward.1} parent=78 // pred_check
          %p415 = pneg %p140
        $region81: #{layer_forward.1} parent=78 // pred_check_branch
          %417 = sbr.rel (%p415) target = $region83
        $region82: #{layer_forward.1} parent=78 // pred_region
          %s418 = smul.u32 2, %s22
          %p419 = scmp.lt.s32.totalorder %s418, 3
          %s420 = scalar_select %p419, %s418, 3
          %s421 = smul.addr %s420, 8
          %s422 = scalar_lea.vmem %s4, %s421
        $region83: #{layer_forward.1} parent=78 // pred_fallthru
          _
      $region79: #{layer_forward.1} parent=5 // pred_fallthru
        _
    $region6: #{layer_forward.1} parent=1 // loop_footer
      %s14 = sadd.s32 1, %s10
    $region7: #{layer_forward.1} parent=1 // loop_footer_branch
      %9 = sbr.rel target = $region3
    $region8: #{layer_forward.1} parent=1 // loop_exit
      _

</llo_original>
